<compile_context>
chip_gen: v7x
topology: tpu7x:2x2x1
jax: 0.10.0
libtpu: 0.0.40
codegen_flags: <defaults>
</compile_context>

<pallas_src>
import functools

import jax
import jax.numpy as jnp
from jax.experimental import pallas as pl
from jax.experimental.pallas import tpu as pltpu


_VMEM_LIMIT_BYTES = 32 * 1024 * 1024          # valid on v5e/v6e/v7x
_TARGET_BLOCK_BYTES = 8 * 1024 * 1024         # in-block + out-block per grid step


def _pick_block_rows(num_rows, row_bytes):
    """Rows of the flattened (B*E) axis per grid step.

    Returns either the full extent (num_rows) or a multiple of 8, so the
    second-to-last block dim always satisfies the (8, 128) tiling rule.
    """
    rows = int(max(1, _TARGET_BLOCK_BYTES // max(int(row_bytes), 1)))
    if rows >= num_rows:
        return num_rows
    rows = max(8, (rows // 8) * 8)
    return min(rows, num_rows)


def _append_kernel(x_ref, cls_ref, o_ref, *, x_cols):
    # x_ref:   (T, N*D)        lane-dense bulk rows
    # cls_ref: (1, D)          resident (constant index_map)
    # o_ref:   (T, N*D + D)    row layout: [ x row | cls ]
    t = o_ref.shape[0]
    d = cls_ref.shape[-1]
    o_ref[:, :x_cols] = x_ref[...]                               # 128-aligned bulk store
    o_ref[:, x_cols:] = jnp.broadcast_to(cls_ref[...], (t, d))   # single masked store


def _front_kernel(x_ref, cls_ref, o_ref):
    # x_ref:   (T, N, D)
    # cls_ref: (1, 1, D)
    # o_ref:   (T, N+1, D)   seq row 0 = cls, rows 1..N = x
    t = o_ref.shape[0]
    d = cls_ref.shape[-1]
    o_ref[:, 0:1, :] = jnp.broadcast_to(cls_ref[...], (t, 1, d))
    o_ref[:, 1:, :] = x_ref[...]


def get_cls_token_seq(x, cls_token, front_append=False, block_rows=None):
    """Equivalent of get_cls_token(flag='seq').forward(x)."""
    B, E, N, D = x.shape
    assert cls_token.shape == (1, 1, 1, D)
    BE = B * E
    # torch.cat requires matching dtypes; downcasts the parameter if x is bf16.
    cls = cls_token.astype(x.dtype)

    itemsize = jnp.dtype(x.dtype).itemsize
    row_bytes = (2 * N + 1) * D * itemsize      # one input row + one output row
    T = block_rows if block_rows is not None else _pick_block_rows(BE, row_bytes)
    grid = (pl.cdiv(BE, T),)
    cparams = pltpu.CompilerParams(
        dimension_semantics=("parallel",),
        vmem_limit_bytes=_VMEM_LIMIT_BYTES,
    )

    if not front_append:
        # Lane-dense layout: fold (seq, hidden) into the lane axis.
        x2 = x.reshape(BE, N * D)
        cls2 = cls.reshape(1, D)
        out2 = pl.pallas_call(
            functools.partial(_append_kernel, x_cols=N * D),
            out_shape=jax.ShapeDtypeStruct((BE, (N + 1) * D), x.dtype),
            grid=grid,
            in_specs=[
                pl.BlockSpec((T, N * D), lambda i: (i, 0)),
                pl.BlockSpec((1, D), lambda i: (0, 0)),
            ],
            out_specs=pl.BlockSpec((T, (N + 1) * D), lambda i: (i, 0)),
            compiler_params=cparams,
        )(x2, cls2)
        return out2.reshape(B, E, N + 1, D)

    # front_append=True: cls occupies sequence position 0, so the bulk write is
    # inherently offset by D lanes in a flattened layout; keep (rows, seq, D)
    # and write the bulk at sublane offset 1 instead (proven-clean pattern).
    x3 = x.reshape(BE, N, D)
    cls3 = cls.reshape(1, 1, D)
    out3 = pl.pallas_call(
        _front_kernel,
        out_shape=jax.ShapeDtypeStruct((BE, N + 1, D), x.dtype),
        grid=grid,
        in_specs=[
            pl.BlockSpec((T, N, D), lambda i: (i, 0, 0)),
            pl.BlockSpec((1, 1, D), lambda i: (0, 0, 0)),
        ],
        out_specs=pl.BlockSpec((T, N + 1, D), lambda i: (i, 0, 0)),
        compiler_params=cparams,
    )(x3, cls3)
    return out3.reshape(B, E, N + 1, D)


# TODO(synk): the 'epoch' branch of the reference uses the einops pattern
# '() n d -> b n d' on a 5-D (1,1,1,1,D) parameter, which does not type-check
# in einops; only the consistent 'seq' path is implemented.


def _trunc_normal(key, shape, std=0.02, dtype=jnp.float32):
    # trunc_normal_(tensor, std=0.02): truncated at +/- 2 std.
    return (jax.random.truncated_normal(key, -2.0, 2.0, shape, dtype) * std).astype(dtype)


if __name__ == "__main__":
    inner_dim = 32
    B, E, N = 2, 3, 8

    key = jax.random.PRNGKey(0)
    k_x, k_cls = jax.random.split(key)

    x = jax.random.normal(k_x, (B, E, N, inner_dim), dtype=jnp.float32)
    cls_token = _trunc_normal(k_cls, (1, 1, 1, inner_dim))  # flag='seq' parameter shape

    cls_bcast = jnp.broadcast_to(cls_token, (B, E, 1, inner_dim)).astype(x.dtype)

    # front_append=False (module default): cls token appended at the end.
    out = jax.block_until_ready(get_cls_token_seq(x, cls_token, front_append=False))
    ref = jnp.concatenate([x, cls_bcast], axis=-2)
    assert out.shape == (B, E, N + 1, inner_dim)
    assert jnp.allclose(out, ref), "mismatch vs reference (append)"

    # front_append=True: cls token prepended.
    out_front = jax.block_until_ready(get_cls_token_seq(x, cls_token, front_append=True))
    ref_front = jnp.concatenate([cls_bcast, x], axis=-2)
    assert jnp.allclose(out_front, ref_front), "mismatch vs reference (front)"

    print("KERNEL_OK")
</pallas_src>

<mosaic_0001>
module attributes {stable_mosaic.version = 11 : i64} {
  func.func @_append_kernel(%arg0: i32, %arg1: memref<6x256xf32, #tpu.memory_space<vmem>>, %arg2: memref<1x32xf32, #tpu.memory_space<vmem>>, %arg3: memref<6x288xf32, #tpu.memory_space<vmem>>) attributes {dimension_semantics = [#tpu.dimension_semantics<parallel>], iteration_bounds = array<i64: 1>, scalar_prefetch = 0 : i64, scratch_operands = 0 : i64, tpu.core_type = #tpu.core_type<tc>, window_params = [{transform_indices = @transform_0, window_bounds = array<i64: 6, 256>}, {pipeline_mode = #tpu.pipeline_mode<synchronous>, transform_indices = @transform_1, window_bounds = array<i64: 1, 32>}, {transform_indices = @transform_2, window_bounds = array<i64: 6, 288>}]} {
    %c0 = arith.constant 0 : index
    %c0_0 = arith.constant 0 : index
    %0 = vector.load %arg1[%c0, %c0_0] : memref<6x256xf32, #tpu.memory_space<vmem>>, vector<6x256xf32>
    %c0_1 = arith.constant 0 : index
    %c0_2 = arith.constant 0 : index
    %1 = vector.load %arg3[%c0_1, %c0_2] : memref<6x288xf32, #tpu.memory_space<vmem>>, vector<6x256xf32>
    tpu.vector_store %arg3[%c0_1, %c0_2], %0 {strides = array<i32>} : memref<6x288xf32, #tpu.memory_space<vmem>>, vector<6x256xf32>,
    %c0_3 = arith.constant 0 : index
    %c0_4 = arith.constant 0 : index
    %2 = vector.load %arg2[%c0_3, %c0_4] : memref<1x32xf32, #tpu.memory_space<vmem>>, vector<1x32xf32>
    %3 = vector.shape_cast %2 : vector<1x32xf32> to vector<1x32xf32>
    %4 = vector.broadcast %3 : vector<1x32xf32> to vector<6x32xf32>
    %c0_5 = arith.constant 0 : index
    %c256 = arith.constant 256 : index
    %5 = vector.load %arg3[%c0_5, %c256] : memref<6x288xf32, #tpu.memory_space<vmem>>, vector<6x32xf32>
    tpu.vector_store %arg3[%c0_5, %c256], %4 {strides = array<i32>} : memref<6x288xf32, #tpu.memory_space<vmem>>, vector<6x32xf32>,
    return
  }
  func.func @transform_0(%arg0: i32) -> (i32, i32) {
    %c0_i32 = arith.constant 0 : i32
    %c0_i32_0 = arith.constant 0 : i32
    return %arg0, %c0_i32 : i32, i32
  }
  func.func @transform_1(%arg0: i32) -> (i32, i32) {
    %c0_i32 = arith.constant 0 : i32
    %c0_i32_0 = arith.constant 0 : i32
    %c0_i32_1 = arith.constant 0 : i32
    return %c0_i32, %c0_i32_0 : i32, i32
  }
  func.func @transform_2(%arg0: i32) -> (i32, i32) {
    %c0_i32 = arith.constant 0 : i32
    %c0_i32_0 = arith.constant 0 : i32
    return %arg0, %c0_i32 : i32, i32
  }
}

</mosaic_0001>

<llo_original>
// kernel: tpu_custom_call.1
$region0: #{tpu_custom_call.1}
  #allocation0 [shape = 'u32[]', space=smem, size = 0x4, offset = 0x4, fixed_abs, tag = 'smem constant byte address 0x4 - core index']
  #allocation1 [shape = 'u32[144,128]{1,0:T(1,128)}', space=vmem, size = 0x12000, scoped, tag = 'internal scratch']
  %s0 = inlined_call_operand.hbm [shape: f32[6,256], index: 0, kind: input, shape index: {}]
  %s1 = inlined_call_operand.vmem [shape: f32[1,32], index: 1, kind: input, shape index: {}]
  %s2 = inlined_call_operand.hbm [shape: f32[6,288], index: 2, kind: output, shape index: {}]
  %s3 = sld [smem:[#allocation0]]
  $region22: #{tpu_custom_call.1} parent=0
    _
  %s5 = ssub.s32 1, %s3
  %s6 = scalar_select 0, %s5, %s3
  $region1: #{tpu_custom_call.1} parent=0
    #allocation2 [shape = 'u8[8192]{0}', space=vmem, size = 0x2000, scoped, tag = 'input window, operand 0, single buffered']
    #allocation3 [shape = 's32[1]{0}', space=sflag, size = 0x4, scoped, tag = 'scoped memory for tpu_custom_call.1']
    #allocation4 [shape = 's32[1]{0}', space=sflag, size = 0x4, scoped, tag = 'scoped memory for tpu_custom_call.1']
    #allocation5 [shape = 'u8[12288]{0}', space=vmem, size = 0x3000, scoped, tag = 'output window, operand 0, single buffered']
    %7 = vsyncpa [#allocation3], 0
    %8 = vsyncpa [#allocation4], 0
    // Predicated region
    $region2: #{tpu_custom_call.1} parent=1 // pred_check
      _
    $region3: #{tpu_custom_call.1} parent=1 // pred_check_branch
      %10 = sbr.rel (0) target = $region5
    $region4: #{tpu_custom_call.1} parent=1 // pred_region
      %s12 = ssub.s32 256, 256
      %13 = vsyncadd [#allocation3], %s12
      %s15 = sshll.u32 [#allocation2], 4
      %s16 = int_to_ptr.vmem [resolvable:$true] %s15
      %18 = dma.hbm_to_vmem [thread:$0]  %s0, 256, %s16, [#allocation3]
    $region5: #{tpu_custom_call.1} parent=1 // pred_fallthru
      _
    // Predicated region
    $region6: #{tpu_custom_call.1} parent=1 // pred_check
      _
    $region7: #{tpu_custom_call.1} parent=1 // pred_check_branch
      %20 = sbr.rel (0) target = $region9
    $region8: #{tpu_custom_call.1} parent=1 // pred_region
      _
    $region9: #{tpu_custom_call.1} parent=1 // pred_fallthru
      _
    // Predicated region
    $region10: #{tpu_custom_call.1} parent=1 // pred_check
      _
    $region11: #{tpu_custom_call.1} parent=1 // pred_check_branch
      %22 = sbr.rel (0) target = $region13
    $region12: #{tpu_custom_call.1} parent=1 // pred_region
      %23 = dma.done [#allocation3], 256
    $region13: #{tpu_custom_call.1} parent=1 // pred_fallthru
      _
    %v24 = vld [vmem:[#allocation2] sm:$0x3f]
    %v25 = vld [vmem:[#allocation2 + $0x8] sm:$0x3f]
    %26 = vst [vmem:[#allocation5] sm:$0x3f] %v24
    %27 = vst [vmem:[#allocation5 + $0x8] sm:$0x3f] %v25
    %v28 = vld [vmem:[%s1] sm:$0x1]
    %v30 = vlaneseq
    %v31 = vshrl.u32 %v30, 7
    %v32 = vsub.s32 0, %v31
    %v33 = vrot.slane %v28, %v32
    %vm35 = vcmask 259072
    %36 = vst.msk [vmem:[#allocation5 + $0x10] sm:$0x3f] %vm35, %v33
    // Predicated region
    $region14: #{tpu_custom_call.1} parent=1 // pred_check
      _
    $region15: #{tpu_custom_call.1} parent=1 // pred_check_branch
      %38 = sbr.rel (0) target = $region17
    $region16: #{tpu_custom_call.1} parent=1 // pred_region
      %s40 = ssub.s32 384, 384
      %41 = vsyncadd [#allocation4], %s40
      %s43 = sshll.u32 [#allocation5], 4
      %s44 = int_to_ptr.vmem [resolvable:$true] %s43
      %46 = dma.vmem_to_hbm [thread:$0]  %s44, 384, %s2, [#allocation4]
    $region17: #{tpu_custom_call.1} parent=1 // pred_fallthru
      _
    // Predicated region
    $region18: #{tpu_custom_call.1} parent=1 // pred_check
      _
    $region19: #{tpu_custom_call.1} parent=1 // pred_check_branch
      %48 = sbr.rel (0) target = $region21
    $region20: #{tpu_custom_call.1} parent=1 // pred_region
      %49 = dma.done [#allocation4], 384
    $region21: #{tpu_custom_call.1} parent=1 // pred_fallthru
      _
    %50 = vsyncpa [#allocation3], 1
    %51 = vsyncpa [#allocation4], 1

</llo_original>
